<compile_context>
chip_gen: v7x
topology: tpu7x:2x2x1
jax: 0.10.0
libtpu: 0.0.40
codegen_flags: <defaults>
</compile_context>

<pallas_src>
import functools

import jax
import jax.numpy as jnp
from jax.experimental import pallas as pl
from jax.experimental.pallas import tpu as pltpu

FPN_DIM = 16
C_IN = 4 * FPN_DIM  # 64


def _round_up(a: int, b: int) -> int:
    return ((a + b - 1) // b) * b


def _seg_decoder_kernel(x_ref, w1_ref, shift_ref, w2_ref, o_ref, *, precision):
    # x_ref:     [64, TM]   pixel tile, channels first (lanes = pixels)
    # w1_ref:    [16, 64]   conv1 weight with BN scale folded in (compute dtype)
    # shift_ref: [16, 1]    folded BN shift (beta - mean*scale), f32
    # w2_ref:    [nc, 16]   conv2 weight (compute dtype)
    # o_ref:     [nc, TM]
    cdt = w1_ref.dtype
    h = jnp.dot(w1_ref[...], x_ref[...].astype(cdt),
                preferred_element_type=jnp.float32, precision=precision)
    h = jnp.maximum(h + shift_ref[...], 0.0)            # BN shift + ReLU (f32)
    o = jnp.dot(w2_ref[...], h.astype(cdt),
                preferred_element_type=jnp.float32, precision=precision)
    o_ref[...] = o.astype(o_ref.dtype)


def _choose_tile(M: int, N: int, tile_m: int) -> int:
    """Pixel-axis tile: a multiple of 128 (or the full extent), capped at
    tile_m, and giving >= 2 grid steps when N == 1 so both v7x TensorCores
    get work (harmless on single-TC v5e/v6e)."""
    min_steps = 2 if N == 1 else 1
    tile = min(tile_m, _round_up(pl.cdiv(M, min_steps), 128))
    if tile >= M:
        return M  # single block; block dim == full array dim (ragged is fine)
    return tile


def seg_decoder_ll_forward(x_nchw, params, *, tile_m=8192,
                           compute_dtype=jnp.bfloat16):
    """x_nchw: [N, 64, H, W] (f32 or bf16) -> [N, num_class, H, W] (same dtype)."""
    w1 = params["conv1_w"]        # [16, 64, 1, 1]  (out, in, kh, kw)
    w2 = params["conv2_w"]        # [num_class, 16, 1, 1]
    gamma = params["bn_gamma"]    # [16]
    beta = params["bn_beta"]      # [16]
    r_mean = params["bn_mean"]    # [16]
    r_var = params["bn_var"]      # [16]
    eps = 1e-5

    num_class = w2.shape[0]
    N, C, H, W = x_nchw.shape
    assert C == C_IN
    M = H * W

    # Fold BN (eval mode) into the conv1 weight + a per-channel shift (f32),
    # then cast the tiny weight matrices to the MXU compute dtype.
    scale = gamma * jax.lax.rsqrt(r_var + eps)                       # [16]
    shift = (beta - r_mean * scale).reshape(FPN_DIM, 1)              # [16, 1] f32
    shift = shift.astype(jnp.float32)
    w1_m = (w1.reshape(FPN_DIM, C_IN) * scale[:, None]).astype(compute_dtype)
    w2_m = w2.reshape(num_class, FPN_DIM).astype(compute_dtype)

    # Channels-first flatten (native NCHW layout: zero-cost reshape, no pad).
    x = x_nchw.reshape(N, C_IN, M)

    tile = _choose_tile(M, N, tile_m)
    grid = (N, pl.cdiv(M, tile))   # ragged last tile handled by Pallas

    out_dtype = x_nchw.dtype
    xi = jnp.dtype(x_nchw.dtype).itemsize
    oi = jnp.dtype(out_dtype).itemsize

    # Pin the MXU precision explicitly: bf16 operands => one pass; f32 operands
    # => exact 6-pass emulation (only if the caller asks for f32 parity).
    use_bf16 = jnp.dtype(compute_dtype) == jnp.dtype(jnp.bfloat16)
    precision = None if use_bf16 else jax.lax.Precision.HIGHEST
    kernel = functools.partial(_seg_decoder_kernel, precision=precision)

    cost = pl.CostEstimate(
        flops=2 * N * M * (C_IN * FPN_DIM + FPN_DIM * num_class),
        transcendentals=0,
        bytes_accessed=N * M * (C_IN * xi + num_class * oi)
        + (C_IN * FPN_DIM + FPN_DIM * num_class)
        * jnp.dtype(compute_dtype).itemsize
        + FPN_DIM * 4,
    )

    # Double-buffered x & out blocks plus f32 temporaries; only raise the
    # scoped VMEM limit if a caller-supplied tile_m exceeds the defaults
    # (at tile=8192 the footprint is ~5-6 MiB and fits every generation).
    est_vmem = (2 * C_IN * tile * xi
                + 2 * num_class * tile * oi
                + 4 * FPN_DIM * tile * 4)
    vmem_limit = est_vmem + (4 << 20) if est_vmem > (16 << 20) else None

    out = pl.pallas_call(
        kernel,
        out_shape=jax.ShapeDtypeStruct((N, num_class, M), out_dtype),
        grid_spec=pltpu.PrefetchScalarGridSpec(
            num_scalar_prefetch=0,
            grid=grid,
            in_specs=[
                # Batch axis squeezed (block size 1), pixel axis tiled.
                pl.BlockSpec((None, C_IN, tile), lambda n, i: (n, 0, i)),
                pl.BlockSpec((FPN_DIM, C_IN), lambda n, i: (0, 0)),
                pl.BlockSpec((FPN_DIM, 1), lambda n, i: (0, 0)),
                pl.BlockSpec((num_class, FPN_DIM), lambda n, i: (0, 0)),
            ],
            out_specs=pl.BlockSpec((None, num_class, tile),
                                   lambda n, i: (n, 0, i)),
        ),
        compiler_params=pltpu.CompilerParams(
            dimension_semantics=("parallel", "parallel"),
            vmem_limit_bytes=vmem_limit),
        cost_estimate=cost,
    )(x, w1_m, shift, w2_m)

    # Zero-cost reshape back to NCHW (no transpose, no slice, no pad).
    return out.reshape(N, num_class, H, W)


def init_params(key, num_class):
    k1, k2, k3, k4, k5, k6 = jax.random.split(key, 6)
    return {
        "conv1_w": jax.random.normal(k1, (FPN_DIM, C_IN, 1, 1), jnp.float32) * 0.05,
        "conv2_w": jax.random.normal(k2, (num_class, FPN_DIM, 1, 1), jnp.float32) * 0.05,
        "bn_gamma": 1.0 + 0.1 * jax.random.normal(k3, (FPN_DIM,), jnp.float32),
        "bn_beta": 0.1 * jax.random.normal(k4, (FPN_DIM,), jnp.float32),
        "bn_mean": 0.1 * jax.random.normal(k5, (FPN_DIM,), jnp.float32),
        "bn_var": jnp.abs(1.0 + 0.1 * jax.random.normal(k6, (FPN_DIM,), jnp.float32)),
    }


def _reference(x, params, num_class):
    eps = 1e-5
    N, C, H, W = x.shape
    w1_m = params["conv1_w"].reshape(FPN_DIM, C_IN)           # [16, 64]
    w2_m = params["conv2_w"].reshape(num_class, FPN_DIM)      # [nc, 16]
    xf = jnp.transpose(x, (0, 2, 3, 1)).reshape(-1, C_IN)     # [NHW, 64]
    h = xf @ w1_m.T
    h = (h - params["bn_mean"]) / jnp.sqrt(params["bn_var"] + eps)
    h = h * params["bn_gamma"] + params["bn_beta"]
    h = jnp.maximum(h, 0.0)
    o = h @ w2_m.T
    return jnp.transpose(o.reshape(N, H, W, num_class), (0, 3, 1, 2))


if __name__ == "__main__":
    key = jax.random.PRNGKey(0)
    kx1, kx2, kx3, kp = jax.random.split(key, 4)

    num_class = 5
    params = init_params(kp, num_class)

    def check(x, **kw):
        out = seg_decoder_ll_forward(x, params, **kw)
        jax.block_until_ready(out)
        ref = _reference(x, params, num_class)
        assert out.shape == ref.shape
        # bf16 single-pass MXU vs f32 reference: ~1e-3 worst-case error here.
        assert jnp.allclose(out, ref, atol=1e-2, rtol=1e-2), \
            float(jnp.max(jnp.abs(out - ref)))

    # Case 1: lane-aligned spatial size (one 256-pixel tile per batch item).
    check(jax.random.normal(kx1, (2, C_IN, 16, 16), jnp.float32))

    # Case 2: ragged spatial size, single full-extent block (no pad/slice).
    check(jax.random.normal(kx2, (2, C_IN, 15, 9), jnp.float32))

    # Case 3: ragged spatial size with multiple tiles -> exercises the partial
    # (OOB-dropped) last tile path, still with no host-side pad or slice.
    check(jax.random.normal(kx2, (2, C_IN, 15, 9), jnp.float32), tile_m=128)

    # Case 4: batch of 1 -> tile capped so the pixel grid has >= 2 steps
    # (keeps both v7x TensorCores busy via the "parallel" grid axes).
    check(jax.random.normal(kx3, (1, C_IN, 16, 32), jnp.float32))

    print("KERNEL_OK")
</pallas_src>

<mosaic_0001>
module attributes {stable_mosaic.version = 11 : i64} {
  func.func @_seg_decoder_kernel(%arg0: i32, %arg1: i32, %arg2: memref<1x64x256xf32, #tpu.memory_space<vmem>>, %arg3: memref<16x64xbf16, #tpu.memory_space<vmem>>, %arg4: memref<16x1xf32, #tpu.memory_space<vmem>>, %arg5: memref<5x16xbf16, #tpu.memory_space<vmem>>, %arg6: memref<1x5x256xf32, #tpu.memory_space<vmem>>) attributes {dimension_semantics = [#tpu.dimension_semantics<parallel>, #tpu.dimension_semantics<parallel>], iteration_bounds = array<i64: 2, 1>, scalar_prefetch = 0 : i64, scratch_operands = 0 : i64, tpu.core_type = #tpu.core_type<tc>, window_params = [{transform_indices = @transform_0, window_bounds = array<i64: 1, 64, 256>}, {pipeline_mode = #tpu.pipeline_mode<synchronous>, transform_indices = @transform_1, window_bounds = array<i64: 16, 64>}, {pipeline_mode = #tpu.pipeline_mode<synchronous>, transform_indices = @transform_2, window_bounds = array<i64: 16, 1>}, {pipeline_mode = #tpu.pipeline_mode<synchronous>, transform_indices = @transform_3, window_bounds = array<i64: 5, 16>}, {transform_indices = @transform_4, window_bounds = array<i64: 1, 5, 256>}]} {
    %c0 = arith.constant 0 : index
    %c0_0 = arith.constant 0 : index
    %0 = vector.load %arg3[%c0, %c0_0] : memref<16x64xbf16, #tpu.memory_space<vmem>>, vector<16x64xbf16>
    %c0_1 = arith.constant 0 : index
    %c0_2 = arith.constant 0 : index
    %c0_3 = arith.constant 0 : index
    %1 = vector.load %arg2[%c0_1, %c0_2, %c0_3] : memref<1x64x256xf32, #tpu.memory_space<vmem>>, vector<1x64x256xf32>
    %2 = vector.shape_cast %1 : vector<1x64x256xf32> to vector<64x256xf32>
    %3 = arith.truncf %2 : vector<64x256xf32> to vector<64x256xbf16>
    %cst = arith.constant dense<0.000000e+00> : vector<16x256xf32>
    %4 = tpu.matmul %0, %3, %cst {dimension_numbers = #tpu.dot_dimension_numbers<[1], [0], [0], [1], [0, 0, 1, 1], [], []>} : vector<16x64xbf16>, vector<64x256xbf16>, vector<16x256xf32> -> vector<16x256xf32>
    %c0_4 = arith.constant 0 : index
    %c0_5 = arith.constant 0 : index
    %5 = vector.load %arg4[%c0_4, %c0_5] : memref<16x1xf32, #tpu.memory_space<vmem>>, vector<16x1xf32>
    %6 = vector.broadcast %5 : vector<16x1xf32> to vector<16x256xf32>
    %7 = arith.addf %4, %6 : vector<16x256xf32>
    %cst_6 = arith.constant 0.000000e+00 : f32
    %8 = vector.broadcast %cst_6 : f32 to vector<16x256xf32>
    %9 = arith.maximumf %7, %8 : vector<16x256xf32>
    %c0_7 = arith.constant 0 : index
    %c0_8 = arith.constant 0 : index
    %10 = vector.load %arg5[%c0_7, %c0_8] : memref<5x16xbf16, #tpu.memory_space<vmem>>, vector<5x16xbf16>
    %11 = arith.truncf %9 : vector<16x256xf32> to vector<16x256xbf16>
    %cst_9 = arith.constant dense<0.000000e+00> : vector<5x256xf32>
    %12 = tpu.matmul %10, %11, %cst_9 {dimension_numbers = #tpu.dot_dimension_numbers<[1], [0], [0], [1], [0, 0, 1, 1], [], []>} : vector<5x16xbf16>, vector<16x256xbf16>, vector<5x256xf32> -> vector<5x256xf32>
    %c0_10 = arith.constant 0 : index
    %c0_11 = arith.constant 0 : index
    %c0_12 = arith.constant 0 : index
    %13 = vector.load %arg6[%c0_10, %c0_11, %c0_12] : memref<1x5x256xf32, #tpu.memory_space<vmem>>, vector<1x5x256xf32>
    %14 = vector.shape_cast %13 : vector<1x5x256xf32> to vector<5x256xf32>
    %15 = vector.shape_cast %12 : vector<5x256xf32> to vector<1x5x256xf32>
    tpu.vector_store %arg6[%c0_10, %c0_11, %c0_12], %15 {strides = array<i32>} : memref<1x5x256xf32, #tpu.memory_space<vmem>>, vector<1x5x256xf32>,
    return
  }
  func.func @transform_0(%arg0: i32, %arg1: i32) -> (i32, i32, i32) {
    %c0_i32 = arith.constant 0 : i32
    %c0_i32_0 = arith.constant 0 : i32
    return %arg0, %c0_i32, %arg1 : i32, i32, i32
  }
  func.func @transform_1(%arg0: i32, %arg1: i32) -> (i32, i32) {
    %c0_i32 = arith.constant 0 : i32
    %c0_i32_0 = arith.constant 0 : i32
    %c0_i32_1 = arith.constant 0 : i32
    return %c0_i32, %c0_i32_0 : i32, i32
  }
  func.func @transform_2(%arg0: i32, %arg1: i32) -> (i32, i32) {
    %c0_i32 = arith.constant 0 : i32
    %c0_i32_0 = arith.constant 0 : i32
    %c0_i32_1 = arith.constant 0 : i32
    return %c0_i32, %c0_i32_0 : i32, i32
  }
  func.func @transform_3(%arg0: i32, %arg1: i32) -> (i32, i32) {
    %c0_i32 = arith.constant 0 : i32
    %c0_i32_0 = arith.constant 0 : i32
    %c0_i32_1 = arith.constant 0 : i32
    return %c0_i32, %c0_i32_0 : i32, i32
  }
  func.func @transform_4(%arg0: i32, %arg1: i32) -> (i32, i32, i32) {
    %c0_i32 = arith.constant 0 : i32
    %c0_i32_0 = arith.constant 0 : i32
    return %arg0, %c0_i32, %arg1 : i32, i32, i32
  }
}

</mosaic_0001>

<llo_original>
// kernel: tpu_custom_call.1
$region0: #{tpu_custom_call.1}
  #allocation0 [shape = 'u32[]', space=smem, size = 0x4, offset = 0x4, fixed_abs, tag = 'smem constant byte address 0x4 - core index']
  #allocation1 [shape = 'u32[144,128]{1,0:T(1,128)}', space=vmem, size = 0x12000, scoped, tag = 'internal scratch']
  %s0 = inlined_call_operand.hbm [shape: f32[2,64,256], index: 0, kind: input, shape index: {}]
  %s1 = inlined_call_operand.vmem [shape: bf16[16,64], index: 1, kind: input, shape index: {}]
  %s2 = inlined_call_operand.vmem [shape: f32[16,1], index: 2, kind: input, shape index: {}]
  %s3 = inlined_call_operand.vmem [shape: bf16[5,16], index: 3, kind: input, shape index: {}]
  %s4 = inlined_call_operand.vmem [shape: f32[2,5,256], index: 4, kind: output, shape index: {}]
  %s5 = sld [smem:[#allocation0]]
  $region53: #{tpu_custom_call.1} parent=0
    _
  %s7 = ssub.s32 1, %s5
  %s8 = scalar_select 0, %s7, %s5
  $region1: #{tpu_custom_call.1} parent=0
    #allocation2 [shape = 'u8[131072]{0}', space=vmem, size = 0x20000, scoped, tag = 'input window, operand 0']
    #allocation3 [shape = 's32[2]{0}', space=sflag, size = 0x8, scoped, tag = 'scoped memory for tpu_custom_call.1']
    %9 = vsyncpa [#allocation3], 0
    %s10 = scalar_lea.sflag [#allocation3], 1
    %11 = vsyncpa %s10, 0
    loop: start=0, step=1, limit=4
    $region2: #{tpu_custom_call.1} parent=1 // loop_pre_header
      _
    $region3: #{tpu_custom_call.1} parent=1 // loop_header
      %s13 = sphi 0, %s17
      %p14 = scmp.ge.s32.totalorder %s13, 4
      %s20 = sphi 0, %s32
      %s21 = sphi 0, %s28
      %s22 = sphi 0, %s20
      %s23 = sphi 0, %s21
      %s24 = sphi 0, %s22
      %s25 = sphi 0, %s23
      %s37 = sphi 0, %s39
      %s40 = sphi 0, %s37
      %s41 = sphi 0, %s40
      %s57 = sphi 0, %s41
      %s61 = sphi 0, %s61
      %s63 = sphi 0, %s61
      %s64 = sphi 0, %s63
      %s78 = sphi 0, %s64
      %s82 = sphi 0, %s82
      %s84 = sphi 0, %s82
      %s85 = sphi 0, %s84
      %s99 = sphi 0, %s85
      %s103 = sphi 0, %s103
      %s105 = sphi 0, %s103
      %s106 = sphi 0, %s105
      %s120 = sphi 0, %s106
      %s128 = sphi 0, %s130
      %s131 = sphi 0, %s128
      %s132 = sphi 0, %s131
      %s148 = sphi 0, %s132
    $region4: #{tpu_custom_call.1} parent=1 // loop_header_branch
      %16 = sbr.rel (%p14) target = $region8
    $region5: #{tpu_custom_call.1} parent=1 // loop_body
      %s18 = ssub.s32 %s13, 1
      %s19 = ssub.s32 %s13, 2
      %s26 = sadd.s32 1, %s21
      %p27 = scmp.ge.s32.totalorder %s26, 1
      %s28 = scalar_select %p27, 0, %s26
      %s29 = sadd.s32 1, %s20
      %s30 = scalar_select %p27, %s29, %s20
      %p31 = scmp.ge.s32.totalorder %s30, 2
      %s32 = scalar_select %p31, 0, %s30
      %s33 = ssub.s32 %s20, %s32
      %s34 = ssub.s32 %s21, %s28
      %s35 = sor.u32 %s33, %s34
      %p36 = scmp.eq.s32.totalorder %s35, 0
      %s38 = sadd.s32 %s37, 1
      %s39 = scalar_select %p36, %s37, %s38
      %p42 = pneg %p36
      %p43 = scmp.eq.s32.totalorder %s13, 1
      %p44 = por %p42, %p43
      %p45 = scmp.ne.s32.totalorder %s37, %s40
      %p46 = scmp.eq.s32.totalorder %s13, 0
      %p47 = por %p45, %p46
      %p48 = scmp.ne.s32.totalorder %s37, %s40
      %p49 = scmp.eq.s32.totalorder %s18, 1
      %p50 = por %p48, %p49
      %p51 = scmp.ne.s32.totalorder %s40, %s41
      %p52 = scmp.eq.s32.totalorder %s18, 0
      %p53 = por %p51, %p52
      %p54 = scmp.ne.s32.totalorder %s40, %s41
      %p55 = scmp.eq.s32.totalorder %s19, 1
      %p56 = por %p54, %p55
      %p58 = scmp.ne.s32.totalorder %s41, %s57
      %p59 = scmp.eq.s32.totalorder %s19, 0
      %p60 = por %p58, %p59
      %s62 = sadd.s32 %s61, 1
      %p65 = scmp.eq.s32.totalorder %s13, 1
      %p66 = scmp.ne.s32.totalorder %s61, %s63
      %p67 = scmp.eq.s32.totalorder %s13, 0
      %p68 = por %p66, %p67
      %p69 = scmp.ne.s32.totalorder %s61, %s63
      %p70 = scmp.eq.s32.totalorder %s18, 1
      %p71 = por %p69, %p70
      %p72 = scmp.ne.s32.totalorder %s63, %s64
      %p73 = scmp.eq.s32.totalorder %s18, 0
      %p74 = por %p72, %p73
      %p75 = scmp.ne.s32.totalorder %s63, %s64
      %p76 = scmp.eq.s32.totalorder %s19, 1
      %p77 = por %p75, %p76
      %p79 = scmp.ne.s32.totalorder %s64, %s78
      %p80 = scmp.eq.s32.totalorder %s19, 0
      %p81 = por %p79, %p80
      %s83 = sadd.s32 %s82, 1
      %p86 = scmp.eq.s32.totalorder %s13, 1
      %p87 = scmp.ne.s32.totalorder %s82, %s84
      %p88 = scmp.eq.s32.totalorder %s13, 0
      %p89 = por %p87, %p88
      %p90 = scmp.ne.s32.totalorder %s82, %s84
      %p91 = scmp.eq.s32.totalorder %s18, 1
      %p92 = por %p90, %p91
      %p93 = scmp.ne.s32.totalorder %s84, %s85
      %p94 = scmp.eq.s32.totalorder %s18, 0
      %p95 = por %p93, %p94
      %p96 = scmp.ne.s32.totalorder %s84, %s85
      %p97 = scmp.eq.s32.totalorder %s19, 1
      %p98 = por %p96, %p97
      %p100 = scmp.ne.s32.totalorder %s85, %s99
      %p101 = scmp.eq.s32.totalorder %s19, 0
      %p102 = por %p100, %p101
      %s104 = sadd.s32 %s103, 1
      %p107 = scmp.eq.s32.totalorder %s13, 1
      %p108 = scmp.ne.s32.totalorder %s103, %s105
      %p109 = scmp.eq.s32.totalorder %s13, 0
      %p110 = por %p108, %p109
      %p111 = scmp.ne.s32.totalorder %s103, %s105
      %p112 = scmp.eq.s32.totalorder %s18, 1
      %p113 = por %p111, %p112
      %p114 = scmp.ne.s32.totalorder %s105, %s106
      %p115 = scmp.eq.s32.totalorder %s18, 0
      %p116 = por %p114, %p115
      %p117 = scmp.ne.s32.totalorder %s105, %s106
      %p118 = scmp.eq.s32.totalorder %s19, 1
      %p119 = por %p117, %p118
      %p121 = scmp.ne.s32.totalorder %s106, %s120
      %p122 = scmp.eq.s32.totalorder %s19, 0
      %p123 = por %p121, %p122
      %s124 = ssub.s32 %s20, %s32
      %s125 = ssub.s32 %s21, %s28
      %s126 = sor.u32 %s124, %s125
      %p127 = scmp.eq.s32.totalorder %s126, 0
      %s129 = sadd.s32 %s128, 1
      %s130 = scalar_select %p127, %s128, %s129
      %p133 = pneg %p127
      %p134 = scmp.eq.s32.totalorder %s13, 1
      %p135 = por %p133, %p134
      %p136 = scmp.ne.s32.totalorder %s128, %s131
      %p137 = scmp.eq.s32.totalorder %s13, 0
      %p138 = por %p136, %p137
      %p139 = scmp.ne.s32.totalorder %s128, %s131
      %p140 = scmp.eq.s32.totalorder %s18, 1
      %p141 = por %p139, %p140
      %p142 = scmp.ne.s32.totalorder %s131, %s132
      %p143 = scmp.eq.s32.totalorder %s18, 0
      %p144 = por %p142, %p143
      %p145 = scmp.ne.s32.totalorder %s131, %s132
      %p146 = scmp.eq.s32.totalorder %s19, 1
      %p147 = por %p145, %p146
      %p149 = scmp.ne.s32.totalorder %s132, %s148
      %p150 = scmp.eq.s32.totalorder %s19, 0
      %p151 = por %p149, %p150
      %p152 = scmp.le.s32.totalorder 1, %s13
      %p153 = scmp.lt.s32.totalorder %s13, 3
      %p154 = pnand %p152, %p153
      %p155 = pneg %p154
      // Predicated region
      $region9: #{tpu_custom_call.1} parent=5 // pred_check
        _
      $region10: #{tpu_custom_call.1} parent=5 // pred_check_branch
        %157 = sbr.rel (%p154) target = $region12
      $region11: #{tpu_custom_call.1} parent=5 // pred_region
        %s158 = ssub.s32 %s13, 1
        // Predicated region
        $region13: #{tpu_custom_call.1} parent=11 // pred_check
          %p159 = pneg %p74
        $region14: #{tpu_custom_call.1} parent=11 // pred_check_branch
          %161 = sbr.rel (%p159) target = $region16
        $region15: #{tpu_custom_call.1} parent=11 // pred_region
          _
        $region16: #{tpu_custom_call.1} parent=11 // pred_fallthru
          _
        // Predicated region
        $region17: #{tpu_custom_call.1} parent=11 // pred_check
          %p162 = pneg %p95
        $region18: #{tpu_custom_call.1} parent=11 // pred_check_branch
          %164 = sbr.rel (%p162) target = $region20
        $region19: #{tpu_custom_call.1} parent=11 // pred_region
          _
        $region20: #{tpu_custom_call.1} parent=11 // pred_fallthru
          _
        // Predicated region
        $region21: #{tpu_custom_call.1} parent=11 // pred_check
          %p165 = pneg %p116
        $region22: #{tpu_custom_call.1} parent=11 // pred_check_branch
          %167 = sbr.rel (%p165) target = $region24
        $region23: #{tpu_custom_call.1} parent=11 // pred_region
          _
        $region24: #{tpu_custom_call.1} parent=11 // pred_fallthru
          _
      $region12: #{tpu_custom_call.1} parent=5 // pred_fallthru
        _
      %p168 = scmp.lt.s32.totalorder %s13, 2
      // Predicated region
      $region25: #{tpu_custom_call.1} parent=5 // pred_check
        %p169 = pneg %p168
      $region26: #{tpu_custom_call.1} parent=5 // pred_check_branch
        %171 = sbr.rel (%p169) target = $region28
      $region27: #{tpu_custom_call.1} parent=5 // pred_region
        // Predicated region
        $region29: #{tpu_custom_call.1} parent=27 // pred_check
          %p172 = pneg %p47
        $region30: #{tpu_custom_call.1} parent=27 // pred_check_branch
          %174 = sbr.rel (%p172) target = $region32
        $region31: #{tpu_custom_call.1} parent=27 // pred_region
          %s175 = sand.u32 %s37, 1
          %s176 = scalar_lea.sflag [#allocation3], %s175
          %s177 = sand.u32 %s37, 1
          %s178 = smul.addr %s177, 128
          %s179 = scalar_lea.vmem [#allocation2], %s178
          %s180 = smul.u32 2, %s21
          %s182 = ssub.s32 2048, 2048
          %183 = vsyncadd %s176, %s182
          %s184 = smul.addr %s20, 16
          %s185 = sadd.s32 %s180, %s184
          %s186 = smul.addr %s185, 128
          %s187 = scalar_lea.hbm %s0, %s186
          %s188 = sshll.u32 %s179, 4
          %s189 = int_to_ptr.vmem [resolvable:$true] %s188
          %194 = dma.hbm_to_vmem [thread:$0]  %s187, 2048, %s189, %s176, 256, 256, 16
        $region32: #{tpu_custom_call.1} parent=27 // pred_fallthru
          _
      $region28: #{tpu_custom_call.1} parent=5 // pred_fallthru
        _
      %p195 = scmp.le.s32.totalorder 1, %s13
      %p196 = scmp.lt.s32.totalorder %s13, 3
      %p197 = pnand %p195, %p196
      %p198 = pneg %p197
      // Predicated region
      $region33: #{tpu_custom_call.1} parent=5 // pred_check
        _
      $region34: #{tpu_custom_call.1} parent=5 // pred_check_branch
        %200 = sbr.rel (%p197) target = $region36
      $region35: #{tpu_custom_call.1} parent=5 // pred_region
        %s201 = ssub.s32 %s13, 1
        %s202 = sand.u32 %s40, 1
        %s203 = scalar_lea.sflag [#allocation3], %s202
        %s204 = sand.u32 %s40, 1
        %s205 = smul.addr %s204, 128
        %s206 = scalar_lea.vmem [#allocation2], %s205
        // Predicated region
        $region37: #{tpu_custom_call.1} parent=35 // pred_check
          %p207 = pneg %p53
        $region38: #{tpu_custom_call.1} parent=35 // pred_check_branch
          %209 = sbr.rel (%p207) target = $region40
        $region39: #{tpu_custom_call.1} parent=35 // pred_region
          %210 = dma.done %s203, 2048
        $region40: #{tpu_custom_call.1} parent=35 // pred_fallthru
          _
        %s211 = sand.u32 %s40, 1
        %s212 = scalar_lea.sflag [#allocation3], %s211
        %s213 = sand.u32 %s40, 1
        %s214 = smul.addr %s213, 128
        %s215 = scalar_lea.vmem [#allocation2], %s214
        %p216 = pneg %p53
        %p217 = pneg %p50
        %p218 = pneg %p74
        %p219 = pneg %p71
        %p220 = pneg %p95
        %p221 = pneg %p92
        %p222 = pneg %p116
        %p223 = pneg %p113
        %p224 = pneg %p144
        %p225 = pneg %p141
        %s226 = smul.u32 2, %s23
        %p227 = scmp.lt.s32.totalorder %s22, 1
        %s228 = scalar_select %p227, %s22, 1
        %p229 = scmp.lt.s32.totalorder %s226, 1
        %s230 = scalar_select %p229, %s226, 1
        %s231 = smul.addr %s228, 2
        %s232 = sadd.s32 %s230, %s231
        %s233 = smul.addr %s232, 8
        %s234 = scalar_lea.vmem %s4, %s233
        %s235 = smul.u32 2, %s23
        %s236 = smul.u32 2, %s23
        %p237 = scmp.lt.s32.totalorder %s22, 1
        %s238 = scalar_select %p237, %s22, 1
        %p239 = scmp.lt.s32.totalorder %s236, 1
        %s240 = scalar_select %p239, %s236, 1
        %s241 = smul.addr %s238, 2
        %s242 = sadd.s32 %s240, %s241
        %s243 = smul.addr %s242, 8
        %s244 = scalar_lea.vmem %s4, %s243
        %s245 = smul.u32 2, %s23
        %v247 = vld [vmem:[%s1] sm:$0xf]
        %v248 = vld [vmem:[%s1 + $0x4] sm:$0xf]
        %v249 = vld [vmem:[%s206] sm:$0xff]
        %v250 = vld [vmem:[%s206 + $0x8] sm:$0xff]
        %v251 = vld [vmem:[%s206 + $0x10] sm:$0xff]
        %v252 = vld [vmem:[%s206 + $0x18] sm:$0xff]
        %v253 = vld [vmem:[%s206 + $0x20] sm:$0xff]
        %v254 = vld [vmem:[%s206 + $0x28] sm:$0xff]
        %v255 = vld [vmem:[%s206 + $0x30] sm:$0xff]
        %v256 = vld [vmem:[%s206 + $0x38] sm:$0xff]
        %v257 = vld [vmem:[%s206 + $0x40] sm:$0xff]
        %v258 = vld [vmem:[%s206 + $0x48] sm:$0xff]
        %v259 = vld [vmem:[%s206 + $0x50] sm:$0xff]
        %v260 = vld [vmem:[%s206 + $0x58] sm:$0xff]
        %v261 = vld [vmem:[%s206 + $0x60] sm:$0xff]
        %v262 = vld [vmem:[%s206 + $0x68] sm:$0xff]
        %v263 = vld [vmem:[%s206 + $0x70] sm:$0xff]
        %v264 = vld [vmem:[%s206 + $0x78] sm:$0xff]
        %v265 = vpack.c.bf16 %v251, %v249
        %v266 = vpack.c.bf16 %v252, %v250
        %v267 = vpack.c.bf16 %v255, %v253
        %v268 = vpack.c.bf16 %v256, %v254
        %v269 = vpack.c.bf16 %v259, %v257
        %v270 = vpack.c.bf16 %v260, %v258
        %v271 = vpack.c.bf16 %v263, %v261
        %v272 = vpack.c.bf16 %v264, %v262
        %v273 = vld [vmem:[%s2] sm:$0xff]
        %v274 = vld [vmem:[%s2 + $0x8] sm:$0xff]
        %276 = vset.pattern.permute.xlu0 0
        %277 = vperm.xlu0 %276, %v273
        %v278 = vpop.permute.xlu0 %277
        %281 = vset.pattern.permute.xlu0 0
        %282 = vperm.xlu0 %281, %v274
        %v283 = vpop.permute.xlu0 %282
        %v287 = vunpack.c.l.b16 %v247
        %v288 = vunpack.c.l.b16 %v248
        %v289 = vpack.c.b16 %v288, %v287
        %vm290 = vcmask 523264
        %v292 = vsel %vm290, %v289, 0
        %294 = vmatprep.subr.bf16.mxu0 %v266
        %295 = vmatpush1.bf16.msra.mxu0 %v265
        %296 = vmatprep.subr.bf16.mxu0 %v268
        %297 = vmatpush1.bf16.msra.mxu0 %v267
        %298 = vmatprep.subr.bf16.mxu0 %v270
        %299 = vmatpush1.bf16.msra.mxu0 %v269
        %300 = vmatprep.subr.bf16.mxu0 %v272
        %301 = vmatpush1.bf16.msra.mxu0 %v271
        %302 = vmatprep.subr.bf16.mxu0 0
        %303 = vmatpush1.bf16.msra.mxu0 0
        %304 = vmatprep.subr.bf16.mxu0 0
        %305 = vmatpush1.bf16.msra.mxu0 0
        %306 = vmatprep.subr.bf16.mxu0 0
        %307 = vmatpush1.bf16.msra.mxu0 0
        %308 = vmatprep.subr.bf16.mxu0 0
        %309 = vmatpush1.bf16.msra.mxu0 0
        %310 = vmatprep.subr.bf16.mxu0 0
        %311 = vmatpush1.bf16.msra.mxu0 0
        %312 = vmatprep.subr.bf16.mxu0 0
        %313 = vmatpush1.bf16.msra.mxu0 0
        %314 = vmatprep.subr.bf16.mxu0 0
        %315 = vmatpush1.bf16.msra.mxu0 0
        %316 = vmatprep.subr.bf16.mxu0 0
        %317 = vmatpush1.bf16.msra.mxu0 0
        %318 = vmatprep.subr.bf16.mxu0 0
        %319 = vmatpush1.bf16.msra.mxu0 0
        %320 = vmatprep.subr.bf16.mxu0 0
        %321 = vmatpush1.bf16.msra.mxu0 0
        %322 = vmatprep.subr.bf16.mxu0 0
        %323 = vmatpush1.bf16.msra.mxu0 0
        %324 = vmatprep.subr.bf16.mxu0 0
        %325 = vmatpush1.bf16.msra.mxu0 0
        %326 = vmatprep.mubr.bf16.mxu0 0
        %327 = vmatmul.mubr.bf16.gmra.mrb[0].mxu0 %v292
        %v328 = vpop.f32.mrb[0].mxu0
        %v329 = vadd.f32 %v278, %v328
        %v330 = vpop.f32.mrb[0].mxu0
        %v331 = vadd.f32 %v278, %v330
        %v332 = vpop.f32.mrb[0].mxu0
        %v333 = vadd.f32 %v283, %v332
        %v334 = vpop.f32.mrb[0].mxu0
        %v335 = vadd.f32 %v283, %v334
        %336 = vdwg.mxu0
        %v337 = vmax.f32 %v329, 0.0
        %v338 = vmax.f32 %v331, 0.0
        %v339 = vmax.f32 %v333, 0.0
        %v340 = vmax.f32 %v335, 0.0
        %v341 = vld [vmem:[%s3] sm:$0x7]
        %v342 = vpack.c.bf16 %v339, %v337
        %v343 = vpack.c.bf16 %v340, %v338
        %vm344 = vcmask 130048
        %v346 = vsel %vm344, %v341, 0
        %348 = vmatprep.subr.bf16.mxu0 %v343
        %349 = vmatpush1.bf16.msra.mxu0 %v342
        %350 = vmatprep.subr.bf16.mxu0 0
        %351 = vmatpush1.bf16.msra.mxu0 0
        %352 = vmatprep.subr.bf16.mxu0 0
        %353 = vmatpush1.bf16.msra.mxu0 0
        %354 = vmatprep.subr.bf16.mxu0 0
        %355 = vmatpush1.bf16.msra.mxu0 0
        %356 = vmatprep.subr.bf16.mxu0 0
        %357 = vmatpush1.bf16.msra.mxu0 0
        %358 = vmatprep.subr.bf16.mxu0 0
        %359 = vmatpush1.bf16.msra.mxu0 0
        %360 = vmatprep.subr.bf16.mxu0 0
        %361 = vmatpush1.bf16.msra.mxu0 0
        %362 = vmatprep.subr.bf16.mxu0 0
        %363 = vmatpush1.bf16.msra.mxu0 0
        %364 = vmatprep.subr.bf16.mxu0 0
        %365 = vmatpush1.bf16.msra.mxu0 0
        %366 = vmatprep.subr.bf16.mxu0 0
        %367 = vmatpush1.bf16.msra.mxu0 0
        %368 = vmatprep.subr.bf16.mxu0 0
        %369 = vmatpush1.bf16.msra.mxu0 0
        %370 = vmatprep.subr.bf16.mxu0 0
        %371 = vmatpush1.bf16.msra.mxu0 0
        %372 = vmatprep.subr.bf16.mxu0 0
        %373 = vmatpush1.bf16.msra.mxu0 0
        %374 = vmatprep.subr.bf16.mxu0 0
        %375 = vmatpush1.bf16.msra.mxu0 0
        %376 = vmatprep.subr.bf16.mxu0 0
        %377 = vmatpush1.bf16.msra.mxu0 0
        %378 = vmatprep.subr.bf16.mxu0 0
        %379 = vmatpush1.bf16.msra.mxu0 0
        %380 = vmatprep.mubr.bf16.mxu0 0
        %381 = vmatmul.mubr.bf16.gmra.mrb[0].mxu0 %v346
        %v382 = vpop.f32.mrb[0].mxu0
        %v383 = vadd.f32 0.0, %v382
        %v384 = vpop.f32.mrb[0].mxu0
        %v385 = vadd.f32 0.0, %v384
        %v386 = vpop.f32.mrb[0].mxu0
        %v387 = vpop.f32.mrb[0].mxu0
        %388 = vdwg.mxu0
        %389 = vst [vmem:[%s244] sm:$0x1f] %v383
        %390 = vst [vmem:[%s244 + $0x8] sm:$0x1f] %v385
        %s391 = smul.u32 2, %s23
        %p392 = scmp.lt.s32.totalorder %s22, 1
        %s393 = scalar_select %p392, %s22, 1
        %p394 = scmp.lt.s32.totalorder %s391, 1
        %s395 = scalar_select %p394, %s391, 1
        %s396 = smul.addr %s393, 2
        %s397 = sadd.s32 %s395, %s396
        %s398 = smul.addr %s397, 8
        %s399 = scalar_lea.vmem %s4, %s398
        // Predicated region
        $region41: #{tpu_custom_call.1} parent=35 // pred_check
          %p400 = pneg %p141
        $region42: #{tpu_custom_call.1} parent=35 // pred_check_branch
          %402 = sbr.rel (%p400) target = $region44
        $region43: #{tpu_custom_call.1} parent=35 // pred_region
          %s403 = smul.u32 2, %s23
        $region44: #{tpu_custom_call.1} parent=35 // pred_fallthru
          _
      $region36: #{tpu_custom_call.1} parent=5 // pred_fallthru
        _
      %p404 = scmp.le.s32.totalorder 2, %s13
      // Predicated region
      $region45: #{tpu_custom_call.1} parent=5 // pred_check
        %p405 = pneg %p404
      $region46: #{tpu_custom_call.1} parent=5 // pred_check_branch
        %407 = sbr.rel (%p405) target = $region48
      $region47: #{tpu_custom_call.1} parent=5 // pred_region
        %s408 = ssub.s32 %s13, 2
        // Predicated region
        $region49: #{tpu_custom_call.1} parent=47 // pred_check
          %p409 = pneg %p147
        $region50: #{tpu_custom_call.1} parent=47 // pred_check_branch
          %411 = sbr.rel (%p409) target = $region52
        $region51: #{tpu_custom_call.1} parent=47 // pred_region
          %s412 = smul.u32 2, %s25
          %p413 = scmp.lt.s32.totalorder %s24, 1
          %s414 = scalar_select %p413, %s24, 1
          %p415 = scmp.lt.s32.totalorder %s412, 1
          %s416 = scalar_select %p415, %s412, 1
          %s417 = smul.addr %s414, 2
          %s418 = sadd.s32 %s416, %s417
          %s419 = smul.addr %s418, 8
          %s420 = scalar_lea.vmem %s4, %s419
        $region52: #{tpu_custom_call.1} parent=47 // pred_fallthru
          _
      $region48: #{tpu_custom_call.1} parent=5 // pred_fallthru
        _
    $region6: #{tpu_custom_call.1} parent=1 // loop_footer
      %s17 = sadd.s32 1, %s13
    $region7: #{tpu_custom_call.1} parent=1 // loop_footer_branch
      %12 = sbr.rel target = $region3
    $region8: #{tpu_custom_call.1} parent=1 // loop_exit
      _
    %421 = vsyncpa [#allocation3], 1
    %s422 = scalar_lea.sflag [#allocation3], 1
    %423 = vsyncpa %s422, 1

</llo_original>
